<compile_context>
chip_gen: v6e
topology: v6e:2x2x1
jax: 0.10.0
libtpu: 0.0.40
codegen_flags: <defaults>
</compile_context>

<pallas_src>
import math

import jax
import jax.numpy as jnp
from jax.experimental import pallas as pl
from jax.experimental.pallas import tpu as pltpu


def _make_rmsnorm_kernel(dim: int, eps: float, wandb: bool, k: int):
    """Build the kernel body.

    k == 1 : block is (tr, dim); one logical row per block row.
    k >  1 : k logical rows of width `dim` are packed along the 128-lane axis
             (block is (tr, k*dim)); each lane segment is normalized
             independently with exact VPU sums.
    """
    inv_sqrt_dim = 1.0 / math.sqrt(dim)

    def normalize(xj):
        ss = jnp.sum(xj * xj, axis=-1, keepdims=True)        # (tr, 1)
        rms = jnp.sqrt(ss) * inv_sqrt_dim
        return xj * pl.reciprocal(rms + eps, approx=False)   # exact: keeps 1e-5 tol

    def compute(x):
        if k == 1:
            return normalize(x)
        parts = [normalize(x[:, j * dim:(j + 1) * dim]) for j in range(k)]
        return jnp.concatenate(parts, axis=-1)

    if wandb:
        def kernel(x_ref, params_ref, o_ref):
            y = compute(x_ref[...].astype(jnp.float32))
            # Fused resident (2, dim_eff) f32 scale/bias block: one DMA, no casts.
            y = y * params_ref[0:1, :] + params_ref[1:2, :]
            o_ref[...] = y.astype(o_ref.dtype)
    else:
        def kernel(x_ref, o_ref):
            y = compute(x_ref[...].astype(jnp.float32))
            o_ref[...] = y.astype(o_ref.dtype)

    return kernel


def _vmem_tuning():
    """Generation-aware (tile budget, vmem_limit_bytes, min grid steps)."""
    try:
        cap = int(getattr(pltpu.get_tpu_info(), "vmem_capacity_bytes",
                          64 * 1024 * 1024))
    except Exception:
        cap = 64 * 1024 * 1024
    if cap >= 100 * 1024 * 1024:
        # v5e / v6e: 128 MiB VMEM, single TensorCore.
        return 64 * 1024 * 1024, 96 * 1024 * 1024, 2
    # v7x-class: 64 MiB VMEM per TensorCore, 2 TCs -> want >= 2 steps per core.
    return 28 * 1024 * 1024, 48 * 1024 * 1024, 4


def _choose_row_tile(rows: int, dim: int, in_bytes: int, out_bytes: int,
                     budget: int, min_steps: int) -> int:
    """Largest row tile whose double-buffered (input + output) footprint fits
    the given VMEM budget, with enough grid steps left for pipelining."""
    per_row = 2 * dim * (in_bytes + out_bytes)    # 2 buffers x (in + out)
    tr = budget // max(per_row, 1)
    tr = int(min(tr, 1024))
    tr = max(8, (tr // 8) * 8)

    rows8 = ((rows + 7) // 8) * 8
    tr = min(tr, rows8)
    tr = max(8, (tr // 8) * 8)

    # Keep >= min_steps grid steps when there is enough work (DMA/compute
    # overlap; on v7x also >= 2 steps per TensorCore under "parallel").
    while tr > 8 and (rows + tr - 1) // tr < min_steps:
        tr = max(8, ((tr // 2) // 8) * 8)
    return tr


def rmsnorm(x, scale=None, bias=None, *, eps: float = 1e-06, wandb: bool = False,
            out_dtype=jnp.float32):
    """RMSNorm over the last axis of `x`.

    Default out_dtype=float32 matches the module's `tensor.float()` semantics;
    out_dtype=x.dtype (e.g. bf16) is an opt-in to cut output HBM traffic."""
    orig_shape = x.shape
    dim = orig_shape[-1]
    rows = 1
    for s in orig_shape[:-1]:
        rows *= s

    in_bytes = jnp.dtype(x.dtype).itemsize
    out_bytes = jnp.dtype(out_dtype).itemsize

    # Small-dim lane packing: fold k rows into the 128-lane axis when possible
    # so loads/stores/DMAs are lane-dense. Fallback to the plain layout when
    # dim doesn't divide 128 or rows % k != 0 (rows stay correct either way).
    k = 1
    if 0 < dim < 128 and 128 % dim == 0:
        kk = 128 // dim
        if rows % kk == 0 and rows >= kk:
            k = kk
    rows_eff = rows // k
    dim_eff = dim * k
    x2 = x.reshape(rows_eff, dim_eff)

    budget, vmem_limit, min_steps = _vmem_tuning()
    tr = _choose_row_tile(rows_eff, dim_eff, in_bytes, out_bytes, budget, min_steps)

    # Ragged last block instead of wrapper pad/slice copies: rows are
    # independent, OOB reads only affect OOB rows, OOB writes are masked.
    grid = ((rows_eff + tr - 1) // tr,)

    kernel = _make_rmsnorm_kernel(dim, eps, wandb, k)

    x_spec = pl.BlockSpec((tr, dim_eff), lambda i: (i, 0))
    out_spec = pl.BlockSpec((tr, dim_eff), lambda i: (i, 0))
    out_shape = jax.ShapeDtypeStruct((rows_eff, dim_eff), out_dtype)

    in_specs = [x_spec]
    args = [x2]
    if wandb:
        params = jnp.stack(
            [scale.reshape(dim).astype(jnp.float32),
             bias.reshape(dim).astype(jnp.float32)], axis=0)   # (2, dim) f32
        if k > 1:
            params = jnp.tile(params, (1, k))                  # (2, k*dim)
        in_specs.append(pl.BlockSpec((2, dim_eff), lambda i: (0, 0)))
        args.append(params)

    cost = pl.CostEstimate(
        flops=int(rows * dim * (4 + (2 if wandb else 0))),
        transcendentals=int(rows),
        bytes_accessed=int(rows * dim * (in_bytes + out_bytes)
                           + (2 * dim * 4 if wandb else 0)),
    )

    out = pl.pallas_call(
        kernel,
        out_shape=out_shape,
        grid_spec=pltpu.PrefetchScalarGridSpec(
            num_scalar_prefetch=0,
            grid=grid,
            in_specs=in_specs,
            out_specs=out_spec,
        ),
        compiler_params=pltpu.CompilerParams(
            dimension_semantics=("parallel",),
            vmem_limit_bytes=vmem_limit,
        ),
        cost_estimate=cost,
    )(*args)

    return out.reshape(orig_shape)


def rmsnorm_ref(x, scale=None, bias=None, *, eps=1e-06, wandb=False):
    """Pure-JAX reference mirroring the PyTorch forward exactly."""
    dim = x.shape[-1]
    x = x.astype(jnp.float32)
    rms = jnp.sqrt(jnp.sum(x * x, axis=-1)) * (1.0 / math.sqrt(dim))
    y = x / (rms[..., None] + eps)
    if wandb:
        y = y * scale.astype(jnp.float32)
        y = y + bias.astype(jnp.float32)
    return y


if __name__ == "__main__":
    key = jax.random.PRNGKey(0)
    k_x, k_s, k_b, k_odd = jax.random.split(key, 4)

    batch, seq, hidden = 2, 8, 32  # dim = hidden = 32
    x = jax.random.normal(k_x, (batch, seq, hidden), dtype=jnp.float32)

    # Parameters as in the module (wandb=True). Random but deterministic
    # values exercise the scale/bias path more strongly than ones/zeros.
    scale = 1.0 + 0.1 * jax.random.normal(k_s, (hidden,), dtype=jnp.float32)
    bias = 0.1 * jax.random.normal(k_b, (hidden,), dtype=jnp.float32)

    # wandb=True path (scale & bias applied inside the kernel; lane-fold path).
    out = rmsnorm(x, scale, bias, eps=1e-06, wandb=True)
    out = jax.block_until_ready(out)
    ref = rmsnorm_ref(x, scale, bias, eps=1e-06, wandb=True)
    assert out.shape == x.shape and out.dtype == jnp.float32
    assert jnp.allclose(out, ref, atol=1e-5, rtol=1e-5)

    # wandb=False path (plain RMSNorm, lane-fold path).
    out2 = rmsnorm(x, eps=1e-06, wandb=False)
    out2 = jax.block_until_ready(out2)
    ref2 = rmsnorm_ref(x, eps=1e-06, wandb=False)
    assert out2.dtype == jnp.float32
    assert jnp.allclose(out2, ref2, atol=1e-5, rtol=1e-5)

    # Odd row count (rows % k != 0 -> plain layout + ragged last grid block)
    # with a bf16 input.
    x_odd = jax.random.normal(k_odd, (3, 5, hidden), dtype=jnp.bfloat16)
    out3 = rmsnorm(x_odd, scale, bias, eps=1e-06, wandb=True)
    out3 = jax.block_until_ready(out3)
    ref3 = rmsnorm_ref(x_odd, scale, bias, eps=1e-06, wandb=True)
    assert out3.shape == x_odd.shape and out3.dtype == jnp.float32
    assert jnp.allclose(out3, ref3, atol=1e-5, rtol=1e-5)

    # Opt-in low-precision output path (deviates from tensor.float() on purpose).
    out4 = rmsnorm(x, scale, bias, eps=1e-06, wandb=True, out_dtype=jnp.bfloat16)
    out4 = jax.block_until_ready(out4)
    assert out4.shape == x.shape and out4.dtype == jnp.bfloat16
    assert jnp.allclose(out4.astype(jnp.float32), ref, atol=5e-2, rtol=5e-2)

    print("KERNEL_OK")
</pallas_src>

<mosaic_0001>
module attributes {stable_mosaic.version = 11 : i64} {
  func.func @kernel(%arg0: i32, %arg1: memref<8x128xf32, #tpu.memory_space<vmem>>, %arg2: memref<2x128xf32, #tpu.memory_space<vmem>>, %arg3: memref<8x128xf32, #tpu.memory_space<vmem>>) attributes {dimension_semantics = [#tpu.dimension_semantics<parallel>], iteration_bounds = array<i64: 1>, scalar_prefetch = 0 : i64, scratch_operands = 0 : i64, tpu.core_type = #tpu.core_type<tc>, window_params = [{transform_indices = @transform_0, window_bounds = array<i64: 8, 128>}, {pipeline_mode = #tpu.pipeline_mode<synchronous>, transform_indices = @transform_1, window_bounds = array<i64: 2, 128>}, {transform_indices = @transform_2, window_bounds = array<i64: 8, 128>}]} {
    %c0 = arith.constant 0 : index
    %c0_0 = arith.constant 0 : index
    %0 = vector.load %arg1[%c0, %c0_0] : memref<8x128xf32, #tpu.memory_space<vmem>>, vector<8x128xf32>
    %1 = vector.extract_strided_slice %0 {offsets = [0, 0], sizes = [8, 32], strides = [1, 1]} : vector<8x128xf32> to vector<8x32xf32>
    %2 = arith.mulf %1, %1 : vector<8x32xf32>
    %cst = arith.constant dense<0.000000e+00> : vector<8xf32>
    %3 = vector.multi_reduction <add>, %2, %cst [1] : vector<8x32xf32> to vector<8xf32>
    %4 = vector.shape_cast %3 : vector<8xf32> to vector<8x1xf32>
    %5 = math.sqrt %4 : vector<8x1xf32>
    %cst_1 = arith.constant 0.176776692 : f32
    %6 = vector.broadcast %cst_1 : f32 to vector<8x1xf32>
    %7 = arith.mulf %5, %6 : vector<8x1xf32>
    %cst_2 = arith.constant 9.99999997E-7 : f32
    %8 = vector.broadcast %cst_2 : f32 to vector<8x1xf32>
    %9 = arith.addf %7, %8 : vector<8x1xf32>
    %10 = tpu.reciprocal %9 : vector<8x1xf32> -> vector<8x1xf32>
    %11 = vector.broadcast %10 : vector<8x1xf32> to vector<8x32xf32>
    %12 = arith.mulf %1, %11 : vector<8x32xf32>
    %13 = vector.extract_strided_slice %0 {offsets = [0, 32], sizes = [8, 32], strides = [1, 1]} : vector<8x128xf32> to vector<8x32xf32>
    %14 = arith.mulf %13, %13 : vector<8x32xf32>
    %cst_3 = arith.constant dense<0.000000e+00> : vector<8xf32>
    %15 = vector.multi_reduction <add>, %14, %cst_3 [1] : vector<8x32xf32> to vector<8xf32>
    %16 = vector.shape_cast %15 : vector<8xf32> to vector<8x1xf32>
    %17 = math.sqrt %16 : vector<8x1xf32>
    %cst_4 = arith.constant 0.176776692 : f32
    %18 = vector.broadcast %cst_4 : f32 to vector<8x1xf32>
    %19 = arith.mulf %17, %18 : vector<8x1xf32>
    %cst_5 = arith.constant 9.99999997E-7 : f32
    %20 = vector.broadcast %cst_5 : f32 to vector<8x1xf32>
    %21 = arith.addf %19, %20 : vector<8x1xf32>
    %22 = tpu.reciprocal %21 : vector<8x1xf32> -> vector<8x1xf32>
    %23 = vector.broadcast %22 : vector<8x1xf32> to vector<8x32xf32>
    %24 = arith.mulf %13, %23 : vector<8x32xf32>
    %25 = vector.extract_strided_slice %0 {offsets = [0, 64], sizes = [8, 32], strides = [1, 1]} : vector<8x128xf32> to vector<8x32xf32>
    %26 = arith.mulf %25, %25 : vector<8x32xf32>
    %cst_6 = arith.constant dense<0.000000e+00> : vector<8xf32>
    %27 = vector.multi_reduction <add>, %26, %cst_6 [1] : vector<8x32xf32> to vector<8xf32>
    %28 = vector.shape_cast %27 : vector<8xf32> to vector<8x1xf32>
    %29 = math.sqrt %28 : vector<8x1xf32>
    %cst_7 = arith.constant 0.176776692 : f32
    %30 = vector.broadcast %cst_7 : f32 to vector<8x1xf32>
    %31 = arith.mulf %29, %30 : vector<8x1xf32>
    %cst_8 = arith.constant 9.99999997E-7 : f32
    %32 = vector.broadcast %cst_8 : f32 to vector<8x1xf32>
    %33 = arith.addf %31, %32 : vector<8x1xf32>
    %34 = tpu.reciprocal %33 : vector<8x1xf32> -> vector<8x1xf32>
    %35 = vector.broadcast %34 : vector<8x1xf32> to vector<8x32xf32>
    %36 = arith.mulf %25, %35 : vector<8x32xf32>
    %37 = vector.extract_strided_slice %0 {offsets = [0, 96], sizes = [8, 32], strides = [1, 1]} : vector<8x128xf32> to vector<8x32xf32>
    %38 = arith.mulf %37, %37 : vector<8x32xf32>
    %cst_9 = arith.constant dense<0.000000e+00> : vector<8xf32>
    %39 = vector.multi_reduction <add>, %38, %cst_9 [1] : vector<8x32xf32> to vector<8xf32>
    %40 = vector.shape_cast %39 : vector<8xf32> to vector<8x1xf32>
    %41 = math.sqrt %40 : vector<8x1xf32>
    %cst_10 = arith.constant 0.176776692 : f32
    %42 = vector.broadcast %cst_10 : f32 to vector<8x1xf32>
    %43 = arith.mulf %41, %42 : vector<8x1xf32>
    %cst_11 = arith.constant 9.99999997E-7 : f32
    %44 = vector.broadcast %cst_11 : f32 to vector<8x1xf32>
    %45 = arith.addf %43, %44 : vector<8x1xf32>
    %46 = tpu.reciprocal %45 : vector<8x1xf32> -> vector<8x1xf32>
    %47 = vector.broadcast %46 : vector<8x1xf32> to vector<8x32xf32>
    %48 = arith.mulf %37, %47 : vector<8x32xf32>
    %49 = tpu.concatenate %12, %24, %36, %48 in 1 : vector<8x32xf32>, vector<8x32xf32>, vector<8x32xf32>, vector<8x32xf32> -> vector<8x128xf32>
    %c0_12 = arith.constant 0 : index
    %c0_13 = arith.constant 0 : index
    %50 = vector.load %arg2[%c0_12, %c0_13] : memref<2x128xf32, #tpu.memory_space<vmem>>, vector<1x128xf32>
    %51 = vector.broadcast %50 : vector<1x128xf32> to vector<8x128xf32>
    %52 = arith.mulf %49, %51 : vector<8x128xf32>
    %c1 = arith.constant 1 : index
    %c0_14 = arith.constant 0 : index
    %53 = vector.load %arg2[%c1, %c0_14] : memref<2x128xf32, #tpu.memory_space<vmem>>, vector<1x128xf32>
    %54 = vector.broadcast %53 : vector<1x128xf32> to vector<8x128xf32>
    %55 = arith.addf %52, %54 : vector<8x128xf32>
    %c0_15 = arith.constant 0 : index
    %c0_16 = arith.constant 0 : index
    %56 = vector.load %arg3[%c0_15, %c0_16] : memref<8x128xf32, #tpu.memory_space<vmem>>, vector<8x128xf32>
    tpu.vector_store %arg3[%c0_15, %c0_16], %55 {strides = array<i32>} : memref<8x128xf32, #tpu.memory_space<vmem>>, vector<8x128xf32>,
    return
  }
  func.func @transform_0(%arg0: i32) -> (i32, i32) {
    %c0_i32 = arith.constant 0 : i32
    %c0_i32_0 = arith.constant 0 : i32
    return %arg0, %c0_i32 : i32, i32
  }
  func.func @transform_1(%arg0: i32) -> (i32, i32) {
    %c0_i32 = arith.constant 0 : i32
    %c0_i32_0 = arith.constant 0 : i32
    %c0_i32_1 = arith.constant 0 : i32
    return %c0_i32, %c0_i32_0 : i32, i32
  }
  func.func @transform_2(%arg0: i32) -> (i32, i32) {
    %c0_i32 = arith.constant 0 : i32
    %c0_i32_0 = arith.constant 0 : i32
    return %arg0, %c0_i32 : i32, i32
  }
}

</mosaic_0001>

<llo_original>
// kernel: tpu_custom_call.1
$region0: #{tpu_custom_call.1}
  #allocation0 [shape = 'u32[]', space=smem, size = 0x4, offset = 0x4, fixed_abs, tag = 'smem constant byte address 0x4 - core index']
  #allocation1 [shape = 'u32[144,128]{1,0:T(1,128)}', space=vmem, size = 0x12000, scoped, tag = 'internal scratch']
  %s0 = inlined_call_operand.hbm [shape: f32[4,128], index: 0, kind: input, shape index: {}]
  %s1 = inlined_call_operand.hbm [shape: f32[2,128], index: 1, kind: input, shape index: {}]
  %s2 = inlined_call_operand.hbm [shape: f32[4,128], index: 2, kind: output, shape index: {}]
  %s3 = sld [smem:[#allocation0]]
  $region26: #{tpu_custom_call.1} parent=0
    _
  %s5 = ssub.s32 1, %s3
  %s6 = scalar_select 0, %s5, %s3
  $region1: #{tpu_custom_call.1} parent=0
    #allocation2 [shape = 'u8[4096]{0}', space=vmem, size = 0x1000, scoped, tag = 'input window, operand 0, single buffered']
    #allocation3 [shape = 's32[1]{0}', space=sflag, size = 0x4, scoped, tag = 'scoped memory for tpu_custom_call.1']
    #allocation4 [shape = 's32[1]{0}', space=sflag, size = 0x4, scoped, tag = 'scoped memory for tpu_custom_call.1']
    #allocation5 [shape = 'u8[1024]{0}', space=vmem, size = 0x400, scoped, tag = 'input window, operand 1, single buffered']
    #allocation6 [shape = 's32[1]{0}', space=sflag, size = 0x4, scoped, tag = 'scoped memory for tpu_custom_call.1']
    #allocation7 [shape = 'u8[4096]{0}', space=vmem, size = 0x1000, scoped, tag = 'output window, operand 0, single buffered']
    %7 = vsyncpa [#allocation3], 0
    %8 = vsyncpa [#allocation6], 0
    %9 = vsyncpa [#allocation4], 0
    // Predicated region
    $region2: #{tpu_custom_call.1} parent=1 // pred_check
      _
    $region3: #{tpu_custom_call.1} parent=1 // pred_check_branch
      %11 = sbr.rel (0) target = $region5
    $region4: #{tpu_custom_call.1} parent=1 // pred_region
      %s13 = ssub.s32 128, 64
      %14 = vsyncadd [#allocation3], %s13
      %s15 = sshll.u32 [#allocation2], 4
      %s16 = int_to_ptr.vmem [resolvable:$true] %s15
      %21 = dma.hbm_to_vmem [thread:$0]  %s0, 64, %s16, [#allocation3], 64, 64, 4
    $region5: #{tpu_custom_call.1} parent=1 // pred_fallthru
      _
    // Predicated region
    $region6: #{tpu_custom_call.1} parent=1 // pred_check
      _
    $region7: #{tpu_custom_call.1} parent=1 // pred_check_branch
      %23 = sbr.rel (0) target = $region9
    $region8: #{tpu_custom_call.1} parent=1 // pred_region
      %s25 = ssub.s32 32, 32
      %26 = vsyncadd [#allocation6], %s25
      %s28 = sshll.u32 [#allocation5], 4
      %s29 = int_to_ptr.vmem [resolvable:$true] %s28
      %31 = dma.hbm_to_vmem [thread:$0]  %s1, 32, %s29, [#allocation6]
    $region9: #{tpu_custom_call.1} parent=1 // pred_fallthru
      _
    // Predicated region
    $region10: #{tpu_custom_call.1} parent=1 // pred_check
      _
    $region11: #{tpu_custom_call.1} parent=1 // pred_check_branch
      %33 = sbr.rel (0) target = $region13
    $region12: #{tpu_custom_call.1} parent=1 // pred_region
      %34 = dma.done [#allocation3], 128
    $region13: #{tpu_custom_call.1} parent=1 // pred_fallthru
      _
    // Predicated region
    $region14: #{tpu_custom_call.1} parent=1 // pred_check
      _
    $region15: #{tpu_custom_call.1} parent=1 // pred_check_branch
      %36 = sbr.rel (0) target = $region17
    $region16: #{tpu_custom_call.1} parent=1 // pred_region
      %37 = dma.done [#allocation6], 32
    $region17: #{tpu_custom_call.1} parent=1 // pred_fallthru
      _
    %v38 = vld [vmem:[#allocation2] sm:$0xff]
    %v39 = vmul.f32 %v38, %v38
    %vm40 = vcmask 261120
    %v41 = vsel %vm40, %v39, 0.0
    %42 = vadd.xlane.f32.xlu0 %v41
    %v43 = vpop.xlane.xlu0 %42
    %v44 = vrsqrt.pop %v43
    %v45 = vmul.f32 %v43, %v44
    %vm46 = vcmp.eq.f32.partialorder %v43, inf
    %v47 = vsel %vm46, %v43, %v45
    %vm48 = vcmp.eq.f32.partialorder %v43, 0.0
    %v49 = vand.u32 %v43, 2147483648
    %v50 = vsel %vm48, %v49, %v47
    %v51 = vmul.f32 %v50, 0.17677669
    %v52 = vadd.f32 %v51, 1e-06
    %v53 = vrcp.pop %v52
    %v54 = vmul.f32 %v38, %v53
    %56 = vrot.lane.b32.xlu0 %v39, 96
    %v57 = vpop.permute.xlu0 %56
    %v59 = vsel %vm40, %v57, 0.0
    %60 = vadd.xlane.f32.xlu0 %v59
    %v61 = vpop.xlane.xlu0 %60
    %v62 = vrsqrt.pop %v61
    %v63 = vmul.f32 %v61, %v62
    %vm64 = vcmp.eq.f32.partialorder %v61, inf
    %v65 = vsel %vm64, %v61, %v63
    %vm66 = vcmp.eq.f32.partialorder %v61, 0.0
    %v67 = vand.u32 %v61, 2147483648
    %v68 = vsel %vm66, %v67, %v65
    %v69 = vmul.f32 %v68, 0.17677669
    %v70 = vadd.f32 %v69, 1e-06
    %v71 = vrcp.pop %v70
    %v72 = vmul.f32 %v38, %v71
    %73 = vrot.lane.b32.xlu0 %v39, 64
    %v74 = vpop.permute.xlu0 %73
    %v76 = vsel %vm40, %v74, 0.0
    %77 = vadd.xlane.f32.xlu0 %v76
    %v78 = vpop.xlane.xlu0 %77
    %v79 = vrsqrt.pop %v78
    %v80 = vmul.f32 %v78, %v79
    %vm81 = vcmp.eq.f32.partialorder %v78, inf
    %v82 = vsel %vm81, %v78, %v80
    %vm83 = vcmp.eq.f32.partialorder %v78, 0.0
    %v84 = vand.u32 %v78, 2147483648
    %v85 = vsel %vm83, %v84, %v82
    %v86 = vmul.f32 %v85, 0.17677669
    %v87 = vadd.f32 %v86, 1e-06
    %v88 = vrcp.pop %v87
    %v89 = vmul.f32 %v38, %v88
    %90 = vrot.lane.b32.xlu0 %v39, 32
    %v91 = vpop.permute.xlu0 %90
    %v93 = vsel %vm40, %v91, 0.0
    %94 = vadd.xlane.f32.xlu0 %v93
    %v95 = vpop.xlane.xlu0 %94
    %v96 = vrsqrt.pop %v95
    %v97 = vmul.f32 %v95, %v96
    %vm98 = vcmp.eq.f32.partialorder %v95, inf
    %v99 = vsel %vm98, %v95, %v97
    %vm100 = vcmp.eq.f32.partialorder %v95, 0.0
    %v101 = vand.u32 %v95, 2147483648
    %v102 = vsel %vm100, %v101, %v99
    %v103 = vmul.f32 %v102, 0.17677669
    %v104 = vadd.f32 %v103, 1e-06
    %v105 = vrcp.pop %v104
    %v106 = vmul.f32 %v38, %v105
    %v107 = vsel %vm40, %v54, %v72
    %vm108 = vcmask 523264
    %v109 = vsel %vm108, %v107, %v89
    %vm110 = vcmask 785408
    %v111 = vsel %vm110, %v109, %v106
    %v112 = vld [vmem:[#allocation5] sm:$0x1]
    %v113 = vlaneseq
    %v114 = vshrl.u32 %v113, 7
    %v115 = vsub.s32 0, %v114
    %v116 = vrot.slane %v112, %v115
    %v117 = vmul.f32 %v111, %v116
    %v118 = vld [vmem:[#allocation5 + $0x1] sm:$0x1]
    %v119 = vlaneseq
    %v120 = vshrl.u32 %v119, 7
    %v121 = vsub.s32 0, %v120
    %v122 = vrot.slane %v118, %v121
    %v123 = vadd.f32 %v117, %v122
    %124 = vst [vmem:[#allocation7] sm:$0xff] %v123
    // Predicated region
    $region18: #{tpu_custom_call.1} parent=1 // pred_check
      _
    $region19: #{tpu_custom_call.1} parent=1 // pred_check_branch
      %126 = sbr.rel (0) target = $region21
    $region20: #{tpu_custom_call.1} parent=1 // pred_region
      %s128 = ssub.s32 128, 64
      %129 = vsyncadd [#allocation4], %s128
      %s130 = sshll.u32 [#allocation7], 4
      %s131 = int_to_ptr.vmem [resolvable:$true] %s130
      %136 = dma.vmem_to_hbm [thread:$0]  %s131, 64, %s2, [#allocation4], 64, 64, 4
    $region21: #{tpu_custom_call.1} parent=1 // pred_fallthru
      _
    // Predicated region
    $region22: #{tpu_custom_call.1} parent=1 // pred_check
      _
    $region23: #{tpu_custom_call.1} parent=1 // pred_check_branch
      %138 = sbr.rel (0) target = $region25
    $region24: #{tpu_custom_call.1} parent=1 // pred_region
      %139 = dma.done [#allocation4], 128
    $region25: #{tpu_custom_call.1} parent=1 // pred_fallthru
      _
    %140 = vsyncpa [#allocation3], 1
    %141 = vsyncpa [#allocation6], 1
    %142 = vsyncpa [#allocation4], 1

</llo_original>
